<compile_context>
chip_gen: v7x
topology: tpu7x:2x2x1
jax: 0.10.0
libtpu: 0.0.40
codegen_flags: <defaults>
</compile_context>

<pallas_src>
import jax
import jax.numpy as jnp
from jax.experimental import pallas as pl
from jax.experimental.pallas import tpu as pltpu


# -----------------------------------------------------------------------------
# Pallas kernel: synthetic-backbone dense + gelu, fused value head, N-tiled.
# -----------------------------------------------------------------------------
def _reward_kernel(tok_ref, pos_ref, wd_ref, bd_ref, wv_ref, v_ref, acc_ref):
    # tok_ref: [TM, H]  bf16  gathered token-embedding rows for this row tile
    # pos_ref: [TM, H]  bf16  positional-embedding rows for this row tile
    # wd_ref : [H, TN]  bf16  column chunk of the synthetic dense weight
    # bd_ref : [1, TN]  f32   column chunk of the dense bias
    # wv_ref : [1, TN]  f32   column chunk of value_head weight (Linear(H,1,bias=False))
    # v_ref  : [TM, 1]  f32   per-token value estimates (written at last N step)
    # acc_ref: [TM, 1]  f32   VMEM scratch: partial value sums over N chunks
    n = pl.program_id(2)

    @pl.when(n == 0)
    def _init():
        acc_ref[...] = jnp.zeros_like(acc_ref)

    # Fused embedding add + bf16 operand (VPU filler under the MXU matmul).
    x = tok_ref[...] + pos_ref[...]                                       # [TM, H] bf16
    # MXU matmul with f32 accumulation; bias + gelu in f32 on this column chunk.
    h = jnp.dot(x, wd_ref[...], preferred_element_type=jnp.float32)       # [TM, TN]
    h = jax.nn.gelu(h + bd_ref[...], approximate=True)                    # VPU/EUP
    # TODO(synk): PyTorch nn.GELU defaults to the exact erf form; tanh-approx is
    # used here (synthetic backbone), EUP-friendly on TPU.
    # value head partial sum over this TN chunk of the H reduction.
    acc_ref[...] += jnp.sum(h * wv_ref[...], axis=-1, keepdims=True)      # [TM, 1]

    @pl.when(n == pl.num_programs(2) - 1)
    def _store():
        v_ref[...] = acc_ref[...]


# -----------------------------------------------------------------------------
# Tile selection / VMEM budgeting.
# -----------------------------------------------------------------------------
def _round_up(x, m):
    return (x + m - 1) // m * m


def _pick_tn(H, target):
    """Largest divisor of H that is <= target, preferring 256-aligned (v6e/v7x MXU)."""
    if H <= target:
        return H
    for align in (256, 128):
        c = (target // align) * align
        while c >= align:
            if H % c == 0:
                return c
            c -= align
    return H


def _select_tiles(S, H):
    """Per-generation (TM, TN, vmem_limit_bytes) from queried VMEM capacity."""
    try:
        vmem_cap = getattr(pltpu.get_tpu_info(), "vmem_capacity_bytes", 64 << 20)
    except Exception:
        vmem_cap = 64 << 20  # conservative default (v7x-class)
    if vmem_cap <= (64 << 20):          # v7x: 64 MiB / TensorCore
        tm_target, tn_target, budget = 256, 1024, 48 << 20
    else:                               # v5e / v6e: 128 MiB
        tm_target, tn_target, budget = 512, 2048, 100 << 20
    # Row tile: multiple of 16 (bf16 sublane packing), capped by the sequence.
    tm = max(16, min(tm_target, _round_up(S, 16)))
    tn = _pick_tn(H, tn_target)
    return tm, tn, budget


# -----------------------------------------------------------------------------
# pallas_call wrapper.
# -----------------------------------------------------------------------------
def _reward_values_pallas(tok, pos, wd, bd, wv, *, tm, tn, vmem_budget):
    """tok: [B, S_pad, H] bf16, pos: [S_pad, H] bf16, wd: [H, H] bf16,
    bd/wv: [1, H] f32.  Returns per-token values [B, S_pad, 1] f32."""
    B, S_pad, H = tok.shape
    assert S_pad % tm == 0 and H % tn == 0
    n_tiles = H // tn
    grid = (B, S_pad // tm, n_tiles)

    def weight_spec(block, index_map):
        # Constant block index across the whole grid when n_tiles == 1:
        # fetched once, single buffer is enough (halves resident-weight VMEM).
        if n_tiles == 1:
            return pl.BlockSpec(block, index_map, pipeline_mode=pl.Buffered(1))
        return pl.BlockSpec(block, index_map)

    return pl.pallas_call(
        _reward_kernel,
        grid=grid,
        in_specs=[
            pl.BlockSpec((None, tm, H), lambda b, s, n: (b, s, 0)),   # tok rows
            pl.BlockSpec((tm, H), lambda b, s, n: (s, 0)),            # pos rows
            weight_spec((H, tn), lambda b, s, n: (0, n)),             # dense W chunk
            weight_spec((1, tn), lambda b, s, n: (0, n)),             # dense bias chunk
            weight_spec((1, tn), lambda b, s, n: (0, n)),             # value-head chunk
        ],
        out_specs=pl.BlockSpec((None, tm, 1), lambda b, s, n: (b, s, 0)),
        out_shape=jax.ShapeDtypeStruct((B, S_pad, 1), jnp.float32),
        scratch_shapes=[pltpu.VMEM((tm, 1), jnp.float32)],
        compiler_params=pltpu.CompilerParams(
            dimension_semantics=("parallel", "parallel", "arbitrary"),
            vmem_limit_bytes=vmem_budget),
    )(tok, pos, wd, bd, wv)


# -----------------------------------------------------------------------------
# Model wrapper (parameter setup + embedding gather are plain-JAX glue).
# -----------------------------------------------------------------------------
def init_params(key, vocab_size, max_seq, hidden):
    ks = jax.random.split(key, 5)
    scale = 0.02
    return {
        "tok_emb": scale * jax.random.normal(ks[0], (vocab_size, hidden), jnp.float32),
        "pos_emb": scale * jax.random.normal(ks[1], (max_seq, hidden), jnp.float32),
        "wd": scale * jax.random.normal(ks[2], (hidden, hidden), jnp.float32),
        "bd": scale * jax.random.normal(ks[3], (1, hidden), jnp.float32),
        # value_head = nn.Linear(n_embd, 1, bias=False): weight [1, H], no bias
        "wv": scale * jax.random.normal(ks[4], (1, hidden), jnp.float32),
    }


def reward_model_forward(params, input_ids, attention_mask=None):
    """RewardModel.forward: returns per-token values of shape [B, S, 1]."""
    # TODO(synk): attention_mask feeds the real pretrained backbone's attention;
    # the synthetic per-token encoder has no attention, so it is accepted but
    # unused — downstream losses must mask padded positions themselves.
    del attention_mask
    B, S = input_ids.shape
    H = params["tok_emb"].shape[1]

    tm, tn, vmem_budget = _select_tiles(S, H)
    s_pad = _round_up(S, tm)

    tok = jnp.take(params["tok_emb"], input_ids, axis=0).astype(jnp.bfloat16)  # [B,S,H]
    pos = params["pos_emb"][:S].astype(jnp.bfloat16)                           # [S,H]
    if s_pad != S:
        tok = jnp.pad(tok, ((0, 0), (0, s_pad - S), (0, 0)))
        pos = jnp.pad(pos, ((0, s_pad - S), (0, 0)))

    wd = params["wd"].astype(jnp.bfloat16)          # [H, H] bf16 MXU operand
    values = _reward_values_pallas(tok, pos, wd, params["bd"], params["wv"],
                                   tm=tm, tn=tn, vmem_budget=vmem_budget)
    return values[:, :S, :]                         # [B, S, 1] f32


# -----------------------------------------------------------------------------
if __name__ == "__main__":
    B, S, H, V = 2, 8, 32, 64

    key = jax.random.PRNGKey(0)
    k_param, k_ids = jax.random.split(key, 2)

    params = init_params(k_param, vocab_size=V, max_seq=S, hidden=H)
    input_ids = jax.random.randint(k_ids, (B, S), 0, V, dtype=jnp.int32)

    values = reward_model_forward(params, input_ids)   # [B, S, 1]
    jax.block_until_ready(values)

    # Reference with the same bf16 operand quantization (f32 accumulation), so
    # only accumulation-order differences remain.
    def ref(ids):
        tok = jnp.take(params["tok_emb"], ids, axis=0).astype(jnp.bfloat16)
        pos = params["pos_emb"][:S].astype(jnp.bfloat16)[None]
        x = tok + pos                                                    # bf16
        h = jnp.dot(x, params["wd"].astype(jnp.bfloat16),
                    preferred_element_type=jnp.float32) + params["bd"][0]
        h = jax.nn.gelu(h, approximate=True)
        return jnp.sum(h * params["wv"][0], axis=-1, keepdims=True)     # [B, S, 1]

    ref_values = ref(input_ids)

    assert values.shape == (B, S, 1)
    assert jnp.allclose(values, ref_values, atol=2e-3, rtol=2e-2), (
        float(jnp.max(jnp.abs(values - ref_values))))

    print("KERNEL_OK")
</pallas_src>

<mosaic_0001>
module attributes {stable_mosaic.version = 11 : i64} {
  func.func @_reward_kernel(%arg0: i32, %arg1: i32, %arg2: i32, %arg3: memref<1x16x32xbf16, #tpu.memory_space<vmem>>, %arg4: memref<16x32xbf16, #tpu.memory_space<vmem>>, %arg5: memref<32x32xbf16, #tpu.memory_space<vmem>>, %arg6: memref<1x32xf32, #tpu.memory_space<vmem>>, %arg7: memref<1x32xf32, #tpu.memory_space<vmem>>, %arg8: memref<1x16x1xf32, #tpu.memory_space<vmem>>, %arg9: memref<16x1xf32, #tpu.memory_space<vmem>>) attributes {dimension_semantics = [#tpu.dimension_semantics<parallel>, #tpu.dimension_semantics<parallel>, #tpu.dimension_semantics<arbitrary>], iteration_bounds = array<i64: 2, 1, 1>, scalar_prefetch = 0 : i64, scratch_operands = 1 : i64, tpu.core_type = #tpu.core_type<tc>, window_params = [{transform_indices = @transform_0, window_bounds = array<i64: 1, 16, 32>}, {transform_indices = @transform_1, window_bounds = array<i64: 16, 32>}, {pipeline_mode = #tpu.pipeline_mode<synchronous>, transform_indices = @transform_2, window_bounds = array<i64: 32, 32>}, {pipeline_mode = #tpu.pipeline_mode<synchronous>, transform_indices = @transform_3, window_bounds = array<i64: 1, 32>}, {pipeline_mode = #tpu.pipeline_mode<synchronous>, transform_indices = @transform_4, window_bounds = array<i64: 1, 32>}, {transform_indices = @transform_5, window_bounds = array<i64: 1, 16, 1>}]} {
    %c0_i32 = arith.constant 0 : i32
    %0 = arith.cmpi eq, %arg2, %c0_i32 : i32
    %1 = arith.extui %0 : i1 to i32
    %c0_i32_0 = arith.constant 0 : i32
    %2 = arith.cmpi ne, %1, %c0_i32_0 : i32
    scf.if %2 {
      %cst_22 = arith.constant 0.000000e+00 : f32
      %36 = vector.broadcast %cst_22 : f32 to vector<16x1xf32>
      %c0_23 = arith.constant 0 : index
      %c0_24 = arith.constant 0 : index
      %37 = vector.load %arg9[%c0_23, %c0_24] : memref<16x1xf32, #tpu.memory_space<vmem>>, vector<16x1xf32>
      tpu.vector_store %arg9[%c0_23, %c0_24], %36 {strides = array<i32>} : memref<16x1xf32, #tpu.memory_space<vmem>>, vector<16x1xf32>,
    } else {
    }
    %c0 = arith.constant 0 : index
    %c0_1 = arith.constant 0 : index
    %c0_2 = arith.constant 0 : index
    %3 = vector.load %arg3[%c0, %c0_1, %c0_2] : memref<1x16x32xbf16, #tpu.memory_space<vmem>>, vector<1x16x32xbf16>
    %4 = vector.shape_cast %3 : vector<1x16x32xbf16> to vector<16x32xbf16>
    %c0_3 = arith.constant 0 : index
    %c0_4 = arith.constant 0 : index
    %5 = vector.load %arg4[%c0_3, %c0_4] : memref<16x32xbf16, #tpu.memory_space<vmem>>, vector<16x32xbf16>
    %6 = arith.addf %4, %5 : vector<16x32xbf16>
    %c0_5 = arith.constant 0 : index
    %c0_6 = arith.constant 0 : index
    %7 = vector.load %arg5[%c0_5, %c0_6] : memref<32x32xbf16, #tpu.memory_space<vmem>>, vector<32x32xbf16>
    %cst = arith.constant dense<0.000000e+00> : vector<16x32xf32>
    %8 = tpu.matmul %6, %7, %cst {dimension_numbers = #tpu.dot_dimension_numbers<[1], [0], [0], [1], [0, 0, 1, 1], [], []>} : vector<16x32xbf16>, vector<32x32xbf16>, vector<16x32xf32> -> vector<16x32xf32>
    %c0_7 = arith.constant 0 : index
    %c0_8 = arith.constant 0 : index
    %9 = vector.load %arg6[%c0_7, %c0_8] : memref<1x32xf32, #tpu.memory_space<vmem>>, vector<1x32xf32>
    %10 = vector.broadcast %9 : vector<1x32xf32> to vector<16x32xf32>
    %11 = arith.addf %8, %10 : vector<16x32xf32>
    %12 = arith.mulf %11, %11 : vector<16x32xf32>
    %13 = arith.mulf %11, %12 : vector<16x32xf32>
    %cst_9 = arith.constant 4.471500e-02 : f32
    %14 = vector.broadcast %cst_9 : f32 to vector<16x32xf32>
    %15 = arith.mulf %14, %13 : vector<16x32xf32>
    %16 = arith.addf %11, %15 : vector<16x32xf32>
    %cst_10 = arith.constant 0.797884583 : f32
    %17 = vector.broadcast %cst_10 : f32 to vector<16x32xf32>
    %18 = arith.mulf %17, %16 : vector<16x32xf32>
    %19 = math.tanh %18 : vector<16x32xf32>
    %cst_11 = arith.constant 1.000000e+00 : f32
    %20 = vector.broadcast %cst_11 : f32 to vector<16x32xf32>
    %21 = arith.addf %20, %19 : vector<16x32xf32>
    %cst_12 = arith.constant 5.000000e-01 : f32
    %22 = vector.broadcast %cst_12 : f32 to vector<16x32xf32>
    %23 = arith.mulf %22, %21 : vector<16x32xf32>
    %24 = arith.mulf %11, %23 : vector<16x32xf32>
    %c0_13 = arith.constant 0 : index
    %c0_14 = arith.constant 0 : index
    %25 = vector.load %arg9[%c0_13, %c0_14] : memref<16x1xf32, #tpu.memory_space<vmem>>, vector<16x1xf32>
    %c0_15 = arith.constant 0 : index
    %c0_16 = arith.constant 0 : index
    %26 = vector.load %arg7[%c0_15, %c0_16] : memref<1x32xf32, #tpu.memory_space<vmem>>, vector<1x32xf32>
    %27 = vector.broadcast %26 : vector<1x32xf32> to vector<16x32xf32>
    %28 = arith.mulf %24, %27 : vector<16x32xf32>
    %cst_17 = arith.constant dense<0.000000e+00> : vector<16xf32>
    %29 = vector.multi_reduction <add>, %28, %cst_17 [1] : vector<16x32xf32> to vector<16xf32>
    %30 = vector.shape_cast %29 : vector<16xf32> to vector<16x1xf32>
    %31 = arith.addf %25, %30 : vector<16x1xf32>
    %c0_18 = arith.constant 0 : index
    %c0_19 = arith.constant 0 : index
    %32 = vector.load %arg9[%c0_18, %c0_19] : memref<16x1xf32, #tpu.memory_space<vmem>>, vector<16x1xf32>
    tpu.vector_store %arg9[%c0_18, %c0_19], %31 {strides = array<i32>} : memref<16x1xf32, #tpu.memory_space<vmem>>, vector<16x1xf32>,
    %c0_i32_20 = arith.constant 0 : i32
    %33 = arith.cmpi eq, %arg2, %c0_i32_20 : i32
    %34 = arith.extui %33 : i1 to i32
    %c0_i32_21 = arith.constant 0 : i32
    %35 = arith.cmpi ne, %34, %c0_i32_21 : i32
    scf.if %35 {
      %c0_22 = arith.constant 0 : index
      %c0_23 = arith.constant 0 : index
      %36 = vector.load %arg9[%c0_22, %c0_23] : memref<16x1xf32, #tpu.memory_space<vmem>>, vector<16x1xf32>
      %c0_24 = arith.constant 0 : index
      %c0_25 = arith.constant 0 : index
      %c0_26 = arith.constant 0 : index
      %37 = vector.load %arg8[%c0_24, %c0_25, %c0_26] : memref<1x16x1xf32, #tpu.memory_space<vmem>>, vector<1x16x1xf32>
      %38 = vector.shape_cast %37 : vector<1x16x1xf32> to vector<16x1xf32>
      %39 = vector.shape_cast %36 : vector<16x1xf32> to vector<1x16x1xf32>
      tpu.vector_store %arg8[%c0_24, %c0_25, %c0_26], %39 {strides = array<i32>} : memref<1x16x1xf32, #tpu.memory_space<vmem>>, vector<1x16x1xf32>,
    } else {
    }
    return
  }
  func.func @transform_0(%arg0: i32, %arg1: i32, %arg2: i32) -> (i32, i32, i32) {
    %c0_i32 = arith.constant 0 : i32
    %c0_i32_0 = arith.constant 0 : i32
    return %arg0, %arg1, %c0_i32 : i32, i32, i32
  }
  func.func @transform_1(%arg0: i32, %arg1: i32, %arg2: i32) -> (i32, i32) {
    %c0_i32 = arith.constant 0 : i32
    %c0_i32_0 = arith.constant 0 : i32
    return %arg1, %c0_i32 : i32, i32
  }
  func.func @transform_2(%arg0: i32, %arg1: i32, %arg2: i32) -> (i32, i32) {
    %c0_i32 = arith.constant 0 : i32
    %c0_i32_0 = arith.constant 0 : i32
    return %c0_i32, %arg2 : i32, i32
  }
  func.func @transform_3(%arg0: i32, %arg1: i32, %arg2: i32) -> (i32, i32) {
    %c0_i32 = arith.constant 0 : i32
    %c0_i32_0 = arith.constant 0 : i32
    return %c0_i32, %arg2 : i32, i32
  }
  func.func @transform_4(%arg0: i32, %arg1: i32, %arg2: i32) -> (i32, i32) {
    %c0_i32 = arith.constant 0 : i32
    %c0_i32_0 = arith.constant 0 : i32
    return %c0_i32, %arg2 : i32, i32
  }
  func.func @transform_5(%arg0: i32, %arg1: i32, %arg2: i32) -> (i32, i32, i32) {
    %c0_i32 = arith.constant 0 : i32
    %c0_i32_0 = arith.constant 0 : i32
    return %arg0, %arg1, %c0_i32 : i32, i32, i32
  }
}

</mosaic_0001>

<llo_original>
// kernel: tpu_custom_call.1
$region0: #{tpu_custom_call.1}
  #allocation0 [shape = 'u32[]', space=smem, size = 0x4, offset = 0x4, fixed_abs, tag = 'smem constant byte address 0x4 - core index']
  #allocation1 [shape = 'u32[144,128]{1,0:T(1,128)}', space=vmem, size = 0x12000, scoped, tag = 'internal scratch']
  #allocation2 [shape = 'f32[16,1]{1,0:T(8,128)}', space=vmem, size = 0x2000, scoped, tag = 'scratch operand']
  %s0 = inlined_call_operand.hbm [shape: bf16[2,16,32], index: 0, kind: input, shape index: {}]
  %s1 = inlined_call_operand.hbm [shape: bf16[16,32], index: 1, kind: input, shape index: {}]
  %s2 = inlined_call_operand.hbm [shape: bf16[32,32], index: 2, kind: input, shape index: {}]
  %s3 = inlined_call_operand.vmem [shape: f32[1,32], index: 3, kind: input, shape index: {}]
  %s4 = inlined_call_operand.vmem [shape: f32[1,32], index: 4, kind: input, shape index: {}]
  %s5 = inlined_call_operand.vmem [shape: f32[2,16,1], index: 5, kind: output, shape index: {}]
  %s6 = sld [smem:[#allocation0]]
  $region73: #{tpu_custom_call.1} parent=0
    _
  %s8 = ssub.s32 1, %s6
  %s9 = scalar_select 0, %s8, %s6
  $region1: #{tpu_custom_call.1} parent=0
    #allocation3 [shape = 'u8[8192]{0}', space=vmem, size = 0x2000, scoped, tag = 'input window, operand 0']
    #allocation4 [shape = 's32[2]{0}', space=sflag, size = 0x8, scoped, tag = 'scoped memory for tpu_custom_call.1']
    #allocation5 [shape = 'u8[4096]{0}', space=vmem, size = 0x1000, scoped, tag = 'input window, operand 1, single buffered']
    #allocation6 [shape = 's32[1]{0}', space=sflag, size = 0x4, scoped, tag = 'scoped memory for tpu_custom_call.1']
    #allocation7 [shape = 'u8[8192]{0}', space=vmem, size = 0x2000, scoped, tag = 'input window, operand 2, single buffered']
    %10 = vsyncpa [#allocation4], 0
    %s11 = scalar_lea.sflag [#allocation4], 1
    %12 = vsyncpa %s11, 0
    %13 = vsyncpa [#allocation6], 0
    loop: start=0, step=1, limit=4
    $region2: #{tpu_custom_call.1} parent=1 // loop_pre_header
      _
    $region3: #{tpu_custom_call.1} parent=1 // loop_header
      %s15 = sphi 0, %s19
      %p16 = scmp.ge.s32.totalorder %s15, 4
      %s22 = sphi 0, %s41
      %s23 = sphi 0, %s37
      %s24 = sphi 0, %s33
      %s25 = sphi 0, %s22
      %s26 = sphi 0, %s23
      %s27 = sphi 0, %s24
      %s28 = sphi 0, %s25
      %s29 = sphi 0, %s26
      %s30 = sphi 0, %s27
      %s46 = sphi 0, %s48
      %s49 = sphi 0, %s46
      %s50 = sphi 0, %s49
      %s66 = sphi 0, %s50
      %s72 = sphi 0, %s74
      %s75 = sphi 0, %s72
      %s76 = sphi 0, %s75
      %s92 = sphi 0, %s76
      %s98 = sphi 0, %s100
      %s101 = sphi 0, %s98
      %s102 = sphi 0, %s101
      %s118 = sphi 0, %s102
      %s124 = sphi 0, %s126
      %s127 = sphi 0, %s124
      %s128 = sphi 0, %s127
      %s144 = sphi 0, %s128
      %s150 = sphi 0, %s152
      %s153 = sphi 0, %s150
      %s154 = sphi 0, %s153
      %s170 = sphi 0, %s154
      %s178 = sphi 0, %s180
      %s181 = sphi 0, %s178
      %s182 = sphi 0, %s181
      %s198 = sphi 0, %s182
    $region4: #{tpu_custom_call.1} parent=1 // loop_header_branch
      %18 = sbr.rel (%p16) target = $region8
    $region5: #{tpu_custom_call.1} parent=1 // loop_body
      %s20 = ssub.s32 %s15, 1
      %s21 = ssub.s32 %s15, 2
      %s31 = sadd.s32 1, %s24
      %p32 = scmp.ge.s32.totalorder %s31, 1
      %s33 = scalar_select %p32, 0, %s31
      %s34 = sadd.s32 1, %s23
      %s35 = scalar_select %p32, %s34, %s23
      %p36 = scmp.ge.s32.totalorder %s35, 1
      %s37 = scalar_select %p36, 0, %s35
      %s38 = sadd.s32 1, %s22
      %s39 = scalar_select %p36, %s38, %s22
      %p40 = scmp.ge.s32.totalorder %s39, 2
      %s41 = scalar_select %p40, 0, %s39
      %s42 = ssub.s32 %s22, %s41
      %s43 = ssub.s32 %s23, %s37
      %s44 = sor.u32 %s42, %s43
      %p45 = scmp.eq.s32.totalorder %s44, 0
      %s47 = sadd.s32 %s46, 1
      %s48 = scalar_select %p45, %s46, %s47
      %p51 = pneg %p45
      %p52 = scmp.eq.s32.totalorder %s15, 1
      %p53 = por %p51, %p52
      %p54 = scmp.ne.s32.totalorder %s46, %s49
      %p55 = scmp.eq.s32.totalorder %s15, 0
      %p56 = por %p54, %p55
      %p57 = scmp.ne.s32.totalorder %s46, %s49
      %p58 = scmp.eq.s32.totalorder %s20, 1
      %p59 = por %p57, %p58
      %p60 = scmp.ne.s32.totalorder %s49, %s50
      %p61 = scmp.eq.s32.totalorder %s20, 0
      %p62 = por %p60, %p61
      %p63 = scmp.ne.s32.totalorder %s49, %s50
      %p64 = scmp.eq.s32.totalorder %s21, 1
      %p65 = por %p63, %p64
      %p67 = scmp.ne.s32.totalorder %s50, %s66
      %p68 = scmp.eq.s32.totalorder %s21, 0
      %p69 = por %p67, %p68
      %s70 = ssub.s32 %s23, %s37
      %p71 = scmp.eq.s32.totalorder %s70, 0
      %s73 = sadd.s32 %s72, 1
      %s74 = scalar_select %p71, %s72, %s73
      %p77 = pneg %p71
      %p78 = scmp.eq.s32.totalorder %s15, 1
      %p79 = por %p77, %p78
      %p80 = scmp.ne.s32.totalorder %s72, %s75
      %p81 = scmp.eq.s32.totalorder %s15, 0
      %p82 = por %p80, %p81
      %p83 = scmp.ne.s32.totalorder %s72, %s75
      %p84 = scmp.eq.s32.totalorder %s20, 1
      %p85 = por %p83, %p84
      %p86 = scmp.ne.s32.totalorder %s75, %s76
      %p87 = scmp.eq.s32.totalorder %s20, 0
      %p88 = por %p86, %p87
      %p89 = scmp.ne.s32.totalorder %s75, %s76
      %p90 = scmp.eq.s32.totalorder %s21, 1
      %p91 = por %p89, %p90
      %p93 = scmp.ne.s32.totalorder %s76, %s92
      %p94 = scmp.eq.s32.totalorder %s21, 0
      %p95 = por %p93, %p94
      %s96 = ssub.s32 %s24, %s33
      %p97 = scmp.eq.s32.totalorder %s96, 0
      %s99 = sadd.s32 %s98, 1
      %s100 = scalar_select %p97, %s98, %s99
      %p103 = pneg %p97
      %p104 = scmp.eq.s32.totalorder %s15, 1
      %p105 = por %p103, %p104
      %p106 = scmp.ne.s32.totalorder %s98, %s101
      %p107 = scmp.eq.s32.totalorder %s15, 0
      %p108 = por %p106, %p107
      %p109 = scmp.ne.s32.totalorder %s98, %s101
      %p110 = scmp.eq.s32.totalorder %s20, 1
      %p111 = por %p109, %p110
      %p112 = scmp.ne.s32.totalorder %s101, %s102
      %p113 = scmp.eq.s32.totalorder %s20, 0
      %p114 = por %p112, %p113
      %p115 = scmp.ne.s32.totalorder %s101, %s102
      %p116 = scmp.eq.s32.totalorder %s21, 1
      %p117 = por %p115, %p116
      %p119 = scmp.ne.s32.totalorder %s102, %s118
      %p120 = scmp.eq.s32.totalorder %s21, 0
      %p121 = por %p119, %p120
      %s122 = ssub.s32 %s24, %s33
      %p123 = scmp.eq.s32.totalorder %s122, 0
      %s125 = sadd.s32 %s124, 1
      %s126 = scalar_select %p123, %s124, %s125
      %p129 = pneg %p123
      %p130 = scmp.eq.s32.totalorder %s15, 1
      %p131 = por %p129, %p130
      %p132 = scmp.ne.s32.totalorder %s124, %s127
      %p133 = scmp.eq.s32.totalorder %s15, 0
      %p134 = por %p132, %p133
      %p135 = scmp.ne.s32.totalorder %s124, %s127
      %p136 = scmp.eq.s32.totalorder %s20, 1
      %p137 = por %p135, %p136
      %p138 = scmp.ne.s32.totalorder %s127, %s128
      %p139 = scmp.eq.s32.totalorder %s20, 0
      %p140 = por %p138, %p139
      %p141 = scmp.ne.s32.totalorder %s127, %s128
      %p142 = scmp.eq.s32.totalorder %s21, 1
      %p143 = por %p141, %p142
      %p145 = scmp.ne.s32.totalorder %s128, %s144
      %p146 = scmp.eq.s32.totalorder %s21, 0
      %p147 = por %p145, %p146
      %s148 = ssub.s32 %s24, %s33
      %p149 = scmp.eq.s32.totalorder %s148, 0
      %s151 = sadd.s32 %s150, 1
      %s152 = scalar_select %p149, %s150, %s151
      %p155 = pneg %p149
      %p156 = scmp.eq.s32.totalorder %s15, 1
      %p157 = por %p155, %p156
      %p158 = scmp.ne.s32.totalorder %s150, %s153
      %p159 = scmp.eq.s32.totalorder %s15, 0
      %p160 = por %p158, %p159
      %p161 = scmp.ne.s32.totalorder %s150, %s153
      %p162 = scmp.eq.s32.totalorder %s20, 1
      %p163 = por %p161, %p162
      %p164 = scmp.ne.s32.totalorder %s153, %s154
      %p165 = scmp.eq.s32.totalorder %s20, 0
      %p166 = por %p164, %p165
      %p167 = scmp.ne.s32.totalorder %s153, %s154
      %p168 = scmp.eq.s32.totalorder %s21, 1
      %p169 = por %p167, %p168
      %p171 = scmp.ne.s32.totalorder %s154, %s170
      %p172 = scmp.eq.s32.totalorder %s21, 0
      %p173 = por %p171, %p172
      %s174 = ssub.s32 %s22, %s41
      %s175 = ssub.s32 %s23, %s37
      %s176 = sor.u32 %s174, %s175
      %p177 = scmp.eq.s32.totalorder %s176, 0
      %s179 = sadd.s32 %s178, 1
      %s180 = scalar_select %p177, %s178, %s179
      %p183 = pneg %p177
      %p184 = scmp.eq.s32.totalorder %s15, 1
      %p185 = por %p183, %p184
      %p186 = scmp.ne.s32.totalorder %s178, %s181
      %p187 = scmp.eq.s32.totalorder %s15, 0
      %p188 = por %p186, %p187
      %p189 = scmp.ne.s32.totalorder %s178, %s181
      %p190 = scmp.eq.s32.totalorder %s20, 1
      %p191 = por %p189, %p190
      %p192 = scmp.ne.s32.totalorder %s181, %s182
      %p193 = scmp.eq.s32.totalorder %s20, 0
      %p194 = por %p192, %p193
      %p195 = scmp.ne.s32.totalorder %s181, %s182
      %p196 = scmp.eq.s32.totalorder %s21, 1
      %p197 = por %p195, %p196
      %p199 = scmp.ne.s32.totalorder %s182, %s198
      %p200 = scmp.eq.s32.totalorder %s21, 0
      %p201 = por %p199, %p200
      %p202 = scmp.le.s32.totalorder 1, %s15
      %p203 = scmp.lt.s32.totalorder %s15, 3
      %p204 = pnand %p202, %p203
      %p205 = pneg %p204
      // Predicated region
      $region9: #{tpu_custom_call.1} parent=5 // pred_check
        _
      $region10: #{tpu_custom_call.1} parent=5 // pred_check_branch
        %207 = sbr.rel (%p204) target = $region12
      $region11: #{tpu_custom_call.1} parent=5 // pred_region
        %s208 = ssub.s32 %s15, 1
        // Predicated region
        $region13: #{tpu_custom_call.1} parent=11 // pred_check
          %p209 = pneg %p88
        $region14: #{tpu_custom_call.1} parent=11 // pred_check_branch
          %211 = sbr.rel (%p209) target = $region16
        $region15: #{tpu_custom_call.1} parent=11 // pred_region
          %s212 = smul.u32 2, %s26
          %s214 = ssub.s32 128, 128
          %215 = vsyncadd [#allocation6], %s214
          %s216 = smul.addr %s212, 64
          %s217 = scalar_lea.hbm %s1, %s216
          %s218 = sshll.u32 [#allocation5], 4
          %s219 = int_to_ptr.vmem [resolvable:$true] %s218
          %224 = dma.hbm_to_vmem [thread:$0]  %s217, 128, %s219, [#allocation6], 64, 64, 4
        $region16: #{tpu_custom_call.1} parent=11 // pred_fallthru
          _
        // Predicated region
        $region17: #{tpu_custom_call.1} parent=11 // pred_check
          %p225 = pneg %p114
        $region18: #{tpu_custom_call.1} parent=11 // pred_check_branch
          %227 = sbr.rel (%p225) target = $region20
        $region19: #{tpu_custom_call.1} parent=11 // pred_region
          %s229 = ssub.s32 256, 256
          %230 = vsyncadd [#allocation6], %s229
          %s231 = smul.addr %s27, 64
          %s232 = scalar_lea.hbm %s2, %s231
          %s233 = sshll.u32 [#allocation7], 4
          %s234 = int_to_ptr.vmem [resolvable:$true] %s233
          %239 = dma.hbm_to_vmem [thread:$0]  %s232, 256, %s234, [#allocation6], 64, 64, 4
        $region20: #{tpu_custom_call.1} parent=11 // pred_fallthru
          _
        // Predicated region
        $region21: #{tpu_custom_call.1} parent=11 // pred_check
          %p240 = pneg %p140
        $region22: #{tpu_custom_call.1} parent=11 // pred_check_branch
          %242 = sbr.rel (%p240) target = $region24
        $region23: #{tpu_custom_call.1} parent=11 // pred_region
          %p243 = scmp.lt.s32.totalorder %s27, 0
          %s244 = scalar_select %p243, %s27, 0
          %s245 = scalar_lea.vmem %s3, %s244
        $region24: #{tpu_custom_call.1} parent=11 // pred_fallthru
          _
        // Predicated region
        $region25: #{tpu_custom_call.1} parent=11 // pred_check
          %p246 = pneg %p166
        $region26: #{tpu_custom_call.1} parent=11 // pred_check_branch
          %248 = sbr.rel (%p246) target = $region28
        $region27: #{tpu_custom_call.1} parent=11 // pred_region
          %p249 = scmp.lt.s32.totalorder %s27, 0
          %s250 = scalar_select %p249, %s27, 0
          %s251 = scalar_lea.vmem %s4, %s250
        $region28: #{tpu_custom_call.1} parent=11 // pred_fallthru
          _
      $region12: #{tpu_custom_call.1} parent=5 // pred_fallthru
        _
      %p252 = scmp.lt.s32.totalorder %s15, 2
      // Predicated region
      $region29: #{tpu_custom_call.1} parent=5 // pred_check
        %p253 = pneg %p252
      $region30: #{tpu_custom_call.1} parent=5 // pred_check_branch
        %255 = sbr.rel (%p253) target = $region32
      $region31: #{tpu_custom_call.1} parent=5 // pred_region
        // Predicated region
        $region33: #{tpu_custom_call.1} parent=31 // pred_check
          %p256 = pneg %p56
        $region34: #{tpu_custom_call.1} parent=31 // pred_check_branch
          %258 = sbr.rel (%p256) target = $region36
        $region35: #{tpu_custom_call.1} parent=31 // pred_region
          %s259 = sand.u32 %s46, 1
          %s260 = scalar_lea.sflag [#allocation4], %s259
          %s261 = sand.u32 %s46, 1
          %s262 = smul.addr %s261, 8
          %s263 = scalar_lea.vmem [#allocation3], %s262
          %s264 = smul.u32 2, %s23
          %s266 = ssub.s32 128, 128
          %267 = vsyncadd %s260, %s266
          %s268 = smul.addr %s22, 2
          %s269 = sadd.s32 %s264, %s268
          %s270 = smul.addr %s269, 64
          %s271 = scalar_lea.hbm %s0, %s270
          %s272 = sshll.u32 %s263, 4
          %s273 = int_to_ptr.vmem [resolvable:$true] %s272
          %278 = dma.hbm_to_vmem [thread:$0]  %s271, 128, %s273, %s260, 64, 64, 4
        $region36: #{tpu_custom_call.1} parent=31 // pred_fallthru
          _
      $region32: #{tpu_custom_call.1} parent=5 // pred_fallthru
        _
      %p279 = scmp.le.s32.totalorder 1, %s15
      %p280 = scmp.lt.s32.totalorder %s15, 3
      %p281 = pnand %p279, %p280
      %p282 = pneg %p281
      // Predicated region
      $region37: #{tpu_custom_call.1} parent=5 // pred_check
        _
      $region38: #{tpu_custom_call.1} parent=5 // pred_check_branch
        %284 = sbr.rel (%p281) target = $region40
      $region39: #{tpu_custom_call.1} parent=5 // pred_region
        %s285 = ssub.s32 %s15, 1
        %s286 = sand.u32 %s49, 1
        %s287 = scalar_lea.sflag [#allocation4], %s286
        %s288 = sand.u32 %s49, 1
        %s289 = smul.addr %s288, 8
        %s290 = scalar_lea.vmem [#allocation3], %s289
        // Predicated region
        $region41: #{tpu_custom_call.1} parent=39 // pred_check
          %p291 = pneg %p62
        $region42: #{tpu_custom_call.1} parent=39 // pred_check_branch
          %293 = sbr.rel (%p291) target = $region44
        $region43: #{tpu_custom_call.1} parent=39 // pred_region
          %294 = dma.done %s287, 128
        $region44: #{tpu_custom_call.1} parent=39 // pred_fallthru
          _
        // Predicated region
        $region45: #{tpu_custom_call.1} parent=39 // pred_check
          %p295 = pneg %p88
        $region46: #{tpu_custom_call.1} parent=39 // pred_check_branch
          %297 = sbr.rel (%p295) target = $region48
        $region47: #{tpu_custom_call.1} parent=39 // pred_region
          %298 = dma.done [#allocation6], 128
        $region48: #{tpu_custom_call.1} parent=39 // pred_fallthru
          _
        // Predicated region
        $region49: #{tpu_custom_call.1} parent=39 // pred_check
          %p299 = pneg %p114
        $region50: #{tpu_custom_call.1} parent=39 // pred_check_branch
          %301 = sbr.rel (%p299) target = $region52
        $region51: #{tpu_custom_call.1} parent=39 // pred_region
          %302 = dma.done [#allocation6], 256
        $region52: #{tpu_custom_call.1} parent=39 // pred_fallthru
          _
        %s303 = sand.u32 %s49, 1
        %s304 = scalar_lea.sflag [#allocation4], %s303
        %s305 = sand.u32 %s49, 1
        %s306 = smul.addr %s305, 8
        %s307 = scalar_lea.vmem [#allocation3], %s306
        %p308 = pneg %p62
        %p309 = pneg %p59
        %p310 = pneg %p88
        %p311 = pneg %p85
        %p312 = pneg %p114
        %p313 = pneg %p111
        %p314 = scmp.lt.s32.totalorder %s27, 0
        %s315 = scalar_select %p314, %s27, 0
        %s316 = scalar_lea.vmem %s3, %s315
        %p317 = pneg %p140
        %p318 = pneg %p137
        %p319 = scmp.lt.s32.totalorder %s27, 0
        %s320 = scalar_select %p319, %s27, 0
        %s321 = scalar_lea.vmem %s4, %s320
        %p322 = pneg %p166
        %p323 = pneg %p163
        %p324 = pneg %p194
        %p325 = pneg %p191
        %s326 = smul.u32 2, %s26
        %p327 = scmp.lt.s32.totalorder %s25, 1
        %s328 = scalar_select %p327, %s25, 1
        %p329 = scmp.lt.s32.totalorder %s326, 1
        %s330 = scalar_select %p329, %s326, 1
        %s331 = smul.addr %s328, 2
        %s332 = sadd.s32 %s330, %s331
        %s333 = smul.addr %s332, 8
        %s334 = scalar_lea.vmem %s5, %s333
        %s335 = smul.u32 2, %s26
        %s336 = smul.u32 2, %s26
        %p337 = scmp.lt.s32.totalorder %s27, 0
        %s338 = scalar_select %p337, %s27, 0
        %s339 = scalar_lea.vmem %s3, %s338
        %p340 = scmp.lt.s32.totalorder %s27, 0
        %s341 = scalar_select %p340, %s27, 0
        %s342 = scalar_lea.vmem %s4, %s341
        %s343 = smul.u32 2, %s26
        %p344 = scmp.lt.s32.totalorder %s25, 1
        %s345 = scalar_select %p344, %s25, 1
        %p346 = scmp.lt.s32.totalorder %s343, 1
        %s347 = scalar_select %p346, %s343, 1
        %s348 = smul.addr %s345, 2
        %s349 = sadd.s32 %s347, %s348
        %s350 = smul.addr %s349, 8
        %s351 = scalar_lea.vmem %s5, %s350
        %s352 = smul.u32 2, %s26
        %p354 = scmp.eq.s32.totalorder %s27, 0
        // Predicated region
        $region53: #{tpu_custom_call.1} parent=39 // pred_check
          %p355 = pneg %p354
        $region54: #{tpu_custom_call.1} parent=39 // pred_check_branch
          %357 = sbr.rel (%p355) target = $region56
        $region55: #{tpu_custom_call.1} parent=39 // pred_region
          %vm358 = vcmask 7168
          %359 = vst.msk [vmem:[#allocation2] sm:$0xff] %vm358, 0.0
          %360 = vst.msk [vmem:[#allocation2 + $0x8] sm:$0xff] %vm358, 0.0
        $region56: #{tpu_custom_call.1} parent=39 // pred_fallthru
          _
        %v361 = vld [vmem:[%s290] sm:$0xf]
        %v362 = vld [vmem:[%s290 + $0x4] sm:$0xf]
        %v363 = vld [vmem:[#allocation5] sm:$0xf]
        %v364 = vld [vmem:[#allocation5 + $0x4] sm:$0xf]
        %v365 = vadd.bf16 %v361, %v363
        %v366 = vadd.bf16 %v362, %v364
        %v367 = vld [vmem:[#allocation7] sm:$0xf]
        %v368 = vld [vmem:[#allocation7 + $0x4] sm:$0xf]
        %v369 = vld [vmem:[#allocation7 + $0x8] sm:$0xf]
        %v370 = vld [vmem:[#allocation7 + $0xc] sm:$0xf]
        %v371 = vld [vmem:[%s339] sm:$0x1]
        %v373 = vlaneseq
        %v374 = vshrl.u32 %v373, 7
        %v375 = vsub.s32 0, %v374
        %v376 = vrot.slane %v371, %v375
        %v380 = vunpack.c.l.b16 %v365
        %v381 = vunpack.c.l.b16 %v366
        %v382 = vpack.c.b16 %v381, %v380
        %v387 = vunpack.c.l.b16 %v367
        %v388 = vunpack.c.l.b16 %v368
        %v389 = vunpack.c.l.b16 %v369
        %v390 = vunpack.c.l.b16 %v370
        %v391 = vpack.c.b16 %v388, %v387
        %v392 = vpack.c.b16 %v390, %v389
        %vm395 = vcmask 261120
        %v397 = vsel %vm395, %v382, 0
        %399 = vmatprep.subr.bf16.mxu0 0
        %400 = vmatpush1.bf16.msra.mxu0 %v391
        %401 = vmatprep.subr.bf16.mxu0 0
        %402 = vmatpush1.bf16.msra.mxu0 %v392
        %403 = vmatprep.subr.bf16.mxu0 0
        %404 = vmatpush1.bf16.msra.mxu0 0
        %405 = vmatprep.subr.bf16.mxu0 0
        %406 = vmatpush1.bf16.msra.mxu0 0
        %407 = vmatprep.subr.bf16.mxu0 0
        %408 = vmatpush1.bf16.msra.mxu0 0
        %409 = vmatprep.subr.bf16.mxu0 0
        %410 = vmatpush1.bf16.msra.mxu0 0
        %411 = vmatprep.subr.bf16.mxu0 0
        %412 = vmatpush1.bf16.msra.mxu0 0
        %413 = vmatprep.subr.bf16.mxu0 0
        %414 = vmatpush1.bf16.msra.mxu0 0
        %415 = vmatprep.subr.bf16.mxu0 0
        %416 = vmatpush1.bf16.msra.mxu0 0
        %417 = vmatprep.subr.bf16.mxu0 0
        %418 = vmatpush1.bf16.msra.mxu0 0
        %419 = vmatprep.subr.bf16.mxu0 0
        %420 = vmatpush1.bf16.msra.mxu0 0
        %421 = vmatprep.subr.bf16.mxu0 0
        %422 = vmatpush1.bf16.msra.mxu0 0
        %423 = vmatprep.subr.bf16.mxu0 0
        %424 = vmatpush1.bf16.msra.mxu0 0
        %425 = vmatprep.subr.bf16.mxu0 0
        %426 = vmatpush1.bf16.msra.mxu0 0
        %427 = vmatprep.subr.bf16.mxu0 0
        %428 = vmatpush1.bf16.msra.mxu0 0
        %429 = vmatprep.subr.bf16.mxu0 0
        %430 = vmatpush1.bf16.msra.mxu0 0
        %431 = vmatprep.mubr.bf16.mxu0 0
        %432 = vmatmul.mubr.bf16.gmra.mrb[0].mxu0 %v397
        %v433 = vpop.f32.mrb[0].mxu0
        %v434 = vadd.f32 %v376, %v433
        %v435 = vpop.f32.mrb[0].mxu0
        %v436 = vpop.f32.mrb[0].mxu0
        %v437 = vadd.f32 %v376, %v436
        %v438 = vpop.f32.mrb[0].mxu0
        %439 = vdwg.mxu0
        %v440 = vmul.f32 %v434, %v434
        %v441 = vmul.f32 %v437, %v437
        %v442 = vmul.f32 %v434, %v440
        %v443 = vmul.f32 %v437, %v441
        %v444 = vmul.f32 %v442, 0.044715
        %v445 = vmul.f32 %v443, 0.044715
        %v446 = vadd.f32 %v434, %v444
        %v447 = vadd.f32 %v437, %v445
        %v448 = vmul.f32 %v446, 0.7978846
        %v449 = vmul.f32 %v447, 0.7978846
        %v450 = vtanh.pop %v448
        %v451 = vtanh.pop %v449
        %v452 = vadd.f32 %v450, 1.0
        %v453 = vadd.f32 %v451, 1.0
        %v454 = vmul.f32 %v452, 0.5
        %v455 = vmul.f32 %v453, 0.5
        %v456 = vmul.f32 %v434, %v454
        %v457 = vmul.f32 %v437, %v455
        %v458 = vld [vmem:[#allocation2] sm:$0xff]
        %v459 = vld [vmem:[#allocation2 + $0x8] sm:$0xff]
        %v460 = vld [vmem:[%s342] sm:$0x1]
        %v462 = vlaneseq
        %v463 = vshrl.u32 %v462, 7
        %v464 = vsub.s32 0, %v463
        %v465 = vrot.slane %v460, %v464
        %v467 = vmul.f32 %v456, %v465
        %v468 = vmul.f32 %v457, %v465
        %v469 = vsel %vm395, %v467, 0.0
        %470 = vadd.xlane.f32.xlu0 %v469
        %v471 = vpop.xlane.xlu0 %470
        %v472 = vsel %vm395, %v468, 0.0
        %473 = vadd.xlane.f32.xlu0 %v472
        %v474 = vpop.xlane.xlu0 %473
        %v475 = vadd.f32 %v458, %v471
        %v476 = vadd.f32 %v459, %v474
        %vm477 = vcmask 7168
        %478 = vst.msk [vmem:[#allocation2] sm:$0xff] %vm477, %v475
        %479 = vst.msk [vmem:[#allocation2 + $0x8] sm:$0xff] %vm477, %v476
        // Predicated region
        $region57: #{tpu_custom_call.1} parent=39 // pred_check
          %p480 = pneg %p354
        $region58: #{tpu_custom_call.1} parent=39 // pred_check_branch
          %482 = sbr.rel (%p480) target = $region60
        $region59: #{tpu_custom_call.1} parent=39 // pred_region
          %v483 = vld [vmem:[#allocation2] sm:$0xff]
          %v484 = vld [vmem:[#allocation2 + $0x8] sm:$0xff]
          %485 = vst.msk [vmem:[%s351] sm:$0xff] %vm477, %v483
          %486 = vst.msk [vmem:[%s351 + $0x8] sm:$0xff] %vm477, %v484
        $region60: #{tpu_custom_call.1} parent=39 // pred_fallthru
          _
        %s487 = smul.u32 2, %s26
        %p488 = scmp.lt.s32.totalorder %s25, 1
        %s489 = scalar_select %p488, %s25, 1
        %p490 = scmp.lt.s32.totalorder %s487, 1
        %s491 = scalar_select %p490, %s487, 1
        %s492 = smul.addr %s489, 2
        %s493 = sadd.s32 %s491, %s492
        %s494 = smul.addr %s493, 8
        %s495 = scalar_lea.vmem %s5, %s494
        // Predicated region
        $region61: #{tpu_custom_call.1} parent=39 // pred_check
          %p496 = pneg %p191
        $region62: #{tpu_custom_call.1} parent=39 // pred_check_branch
          %498 = sbr.rel (%p496) target = $region64
        $region63: #{tpu_custom_call.1} parent=39 // pred_region
          %s499 = smul.u32 2, %s26
        $region64: #{tpu_custom_call.1} parent=39 // pred_fallthru
          _
      $region40: #{tpu_custom_call.1} parent=5 // pred_fallthru
        _
      %p500 = scmp.le.s32.totalorder 2, %s15
      // Predicated region
      $region65: #{tpu_custom_call.1} parent=5 // pred_check
        %p501 = pneg %p500
      $region66: #{tpu_custom_call.1} parent=5 // pred_check_branch
        %503 = sbr.rel (%p501) target = $region68
      $region67: #{tpu_custom_call.1} parent=5 // pred_region
        %s504 = ssub.s32 %s15, 2
        // Predicated region
        $region69: #{tpu_custom_call.1} parent=67 // pred_check
          %p505 = pneg %p197
        $region70: #{tpu_custom_call.1} parent=67 // pred_check_branch
          %507 = sbr.rel (%p505) target = $region72
        $region71: #{tpu_custom_call.1} parent=67 // pred_region
          %s508 = smul.u32 2, %s29
          %p509 = scmp.lt.s32.totalorder %s28, 1
          %s510 = scalar_select %p509, %s28, 1
          %p511 = scmp.lt.s32.totalorder %s508, 1
          %s512 = scalar_select %p511, %s508, 1
          %s513 = smul.addr %s510, 2
          %s514 = sadd.s32 %s512, %s513
          %s515 = smul.addr %s514, 8
          %s516 = scalar_lea.vmem %s5, %s515
        $region72: #{tpu_custom_call.1} parent=67 // pred_fallthru
          _
      $region68: #{tpu_custom_call.1} parent=5 // pred_fallthru
        _
    $region6: #{tpu_custom_call.1} parent=1 // loop_footer
      %s19 = sadd.s32 1, %s15
    $region7: #{tpu_custom_call.1} parent=1 // loop_footer_branch
      %14 = sbr.rel target = $region3
    $region8: #{tpu_custom_call.1} parent=1 // loop_exit
      _
    %517 = vsyncpa [#allocation4], 1
    %s518 = scalar_lea.sflag [#allocation4], 1
    %519 = vsyncpa %s518, 1
    %520 = vsyncpa [#allocation6], 1

</llo_original>
